<compile_context>
chip_gen: v5e
topology: v5e:2x2
jax: 0.10.0
libtpu: 0.0.40
codegen_flags: <defaults>
</compile_context>

<pallas_src>
import functools
import math

import jax
import jax.numpy as jnp
from jax.experimental import pallas as pl
from jax.experimental.pallas import tpu as pltpu


_VMEM_LIMIT = 48 * 1024 * 1024  # fits v7x (64 MiB physical) and v5e/v6e


def _cparams(dims):
    return pltpu.CompilerParams(dimension_semantics=dims,
                                vmem_limit_bytes=_VMEM_LIMIT)


def _pick_tile(dim, target, align):
    """Largest tile <= target that is `align`-aligned and divides dim, else dim."""
    if dim <= target:
        return dim
    t = (min(target, dim) // align) * align
    while t >= align:
        if dim % t == 0:
            return t
        t -= align
    return dim


def _gelu(x):
    # tanh-approximate GELU (matches BERT's gelu closely)
    c = math.sqrt(2.0 / math.pi)
    return 0.5 * x * (1.0 + jnp.tanh(c * (x + 0.044715 * x * x * x)))


# --------------------------- tiled linear (QKV) -----------------------------

def _linear_kernel(x_ref, w_ref, b_ref, o_ref, acc_ref):
    @pl.when(pl.program_id(2) == 0)
    def _():
        acc_ref[...] = jnp.zeros_like(acc_ref)

    acc_ref[...] += jnp.dot(x_ref[...], w_ref[...],
                            preferred_element_type=jnp.float32)

    @pl.when(pl.program_id(2) == pl.num_programs(2) - 1)
    def _():
        o_ref[...] = (acc_ref[...] + b_ref[...]).astype(o_ref.dtype)


def linear(x, w, b, *, out_dtype=jnp.bfloat16, tm_t=256, tn_t=256, tk_t=512):
    M, K = x.shape
    N = w.shape[1]
    tm = _pick_tile(M, tm_t, 16)
    tn = _pick_tile(N, tn_t, 128)
    tk = _pick_tile(K, tk_t, 128)
    grid = (M // tm, N // tn, K // tk)
    return pl.pallas_call(
        _linear_kernel,
        out_shape=jax.ShapeDtypeStruct((M, N), out_dtype),
        grid=grid,
        in_specs=[
            pl.BlockSpec((tm, tk), lambda i, j, k: (i, k)),
            pl.BlockSpec((tk, tn), lambda i, j, k: (k, j)),
            pl.BlockSpec((1, tn), lambda i, j, k: (0, j)),
        ],
        out_specs=pl.BlockSpec((tm, tn), lambda i, j, k: (i, j)),
        scratch_shapes=[pltpu.VMEM((tm, tn), jnp.float32)],
        compiler_params=_cparams(("parallel", "parallel", "arbitrary")),
    )(x, w, b.reshape(1, N).astype(jnp.float32))


# ------------------ tiled linear fused with residual + LN -------------------

def _linear_add_ln_kernel(x_ref, w_ref, b_ref, res_ref, g_ref, bt_ref,
                          o_ref, acc_ref, *, eps):
    @pl.when(pl.program_id(1) == 0)
    def _():
        acc_ref[...] = jnp.zeros_like(acc_ref)

    acc_ref[...] += jnp.dot(x_ref[...], w_ref[...],
                            preferred_element_type=jnp.float32)

    @pl.when(pl.program_id(1) == pl.num_programs(1) - 1)
    def _():
        h = acc_ref[...] + b_ref[...] + res_ref[...].astype(jnp.float32)
        mean = jnp.mean(h, axis=-1, keepdims=True)
        var = jnp.mean((h - mean) ** 2, axis=-1, keepdims=True)
        y = (h - mean) * jax.lax.rsqrt(var + eps)
        o_ref[...] = (y * g_ref[...] + bt_ref[...]).astype(o_ref.dtype)


def linear_add_layernorm(x, w, b, residual, gamma, beta, *, eps=1e-12,
                         out_dtype=jnp.bfloat16, tm_t=256, tk_t=512):
    M, K = x.shape
    N = w.shape[1]
    tm = _pick_tile(M, tm_t, 16)
    tk = _pick_tile(K, tk_t, 128)
    grid = (M // tm, K // tk)
    return pl.pallas_call(
        functools.partial(_linear_add_ln_kernel, eps=eps),
        out_shape=jax.ShapeDtypeStruct((M, N), out_dtype),
        grid=grid,
        in_specs=[
            pl.BlockSpec((tm, tk), lambda i, k: (i, k)),
            pl.BlockSpec((tk, N), lambda i, k: (k, 0)),
            pl.BlockSpec((1, N), lambda i, k: (0, 0)),
            pl.BlockSpec((tm, N), lambda i, k: (i, 0)),
            pl.BlockSpec((1, N), lambda i, k: (0, 0)),
            pl.BlockSpec((1, N), lambda i, k: (0, 0)),
        ],
        out_specs=pl.BlockSpec((tm, N), lambda i, k: (i, 0)),
        scratch_shapes=[pltpu.VMEM((tm, N), jnp.float32)],
        compiler_params=_cparams(("parallel", "arbitrary")),
    )(x, w, b.reshape(1, N).astype(jnp.float32), residual,
      gamma.reshape(1, N).astype(jnp.float32),
      beta.reshape(1, N).astype(jnp.float32))


# -------------- fused FFN: x@w1 + b1 -> GELU -> @w2 + b2 -> add+LN ----------

def _ffn_ln_kernel(x_ref, w1_ref, b1_ref, w2_ref, b2_ref, res_ref, g_ref,
                   bt_ref, o_ref, acc_ref, *, eps):
    @pl.when(pl.program_id(1) == 0)
    def _():
        acc_ref[...] = jnp.zeros_like(acc_ref)

    mid = jnp.dot(x_ref[...], w1_ref[...],
                  preferred_element_type=jnp.float32) + b1_ref[...]
    mid = _gelu(mid).astype(w2_ref.dtype)
    acc_ref[...] += jnp.dot(mid, w2_ref[...],
                            preferred_element_type=jnp.float32)

    @pl.when(pl.program_id(1) == pl.num_programs(1) - 1)
    def _():
        h = acc_ref[...] + b2_ref[...] + res_ref[...].astype(jnp.float32)
        mean = jnp.mean(h, axis=-1, keepdims=True)
        var = jnp.mean((h - mean) ** 2, axis=-1, keepdims=True)
        y = (h - mean) * jax.lax.rsqrt(var + eps)
        o_ref[...] = (y * g_ref[...] + bt_ref[...]).astype(o_ref.dtype)


def ffn_add_layernorm(x, w1, b1, w2, b2, residual, gamma, beta, *, eps=1e-12,
                      out_dtype=jnp.bfloat16, tm_t=256, tj_t=512):
    M, H = x.shape
    I = w1.shape[1]
    tm = _pick_tile(M, tm_t, 16)
    tj = _pick_tile(I, tj_t, 128)
    grid = (M // tm, I // tj)
    return pl.pallas_call(
        functools.partial(_ffn_ln_kernel, eps=eps),
        out_shape=jax.ShapeDtypeStruct((M, H), out_dtype),
        grid=grid,
        in_specs=[
            pl.BlockSpec((tm, H), lambda i, j: (i, 0)),
            pl.BlockSpec((H, tj), lambda i, j: (0, j)),
            pl.BlockSpec((1, tj), lambda i, j: (0, j)),
            pl.BlockSpec((tj, H), lambda i, j: (j, 0)),
            pl.BlockSpec((1, H), lambda i, j: (0, 0)),
            pl.BlockSpec((tm, H), lambda i, j: (i, 0)),
            pl.BlockSpec((1, H), lambda i, j: (0, 0)),
            pl.BlockSpec((1, H), lambda i, j: (0, 0)),
        ],
        out_specs=pl.BlockSpec((tm, H), lambda i, j: (i, 0)),
        scratch_shapes=[pltpu.VMEM((tm, H), jnp.float32)],
        compiler_params=_cparams(("parallel", "arbitrary")),
    )(x, w1, b1.reshape(1, I).astype(jnp.float32), w2,
      b2.reshape(1, H).astype(jnp.float32), residual,
      gamma.reshape(1, H).astype(jnp.float32),
      beta.reshape(1, H).astype(jnp.float32))


# --------------------------- layernorm (embeddings) -------------------------

def _ln_kernel(x_ref, g_ref, b_ref, o_ref, *, eps):
    x = x_ref[...].astype(jnp.float32)
    mean = jnp.mean(x, axis=-1, keepdims=True)
    var = jnp.mean((x - mean) ** 2, axis=-1, keepdims=True)
    y = (x - mean) * jax.lax.rsqrt(var + eps)
    o_ref[...] = (y * g_ref[...] + b_ref[...]).astype(o_ref.dtype)


def layernorm(x, gamma, beta, *, eps=1e-12, out_dtype=jnp.bfloat16, tm_t=512):
    M, H = x.shape
    tm = _pick_tile(M, tm_t, 8)
    return pl.pallas_call(
        functools.partial(_ln_kernel, eps=eps),
        out_shape=jax.ShapeDtypeStruct((M, H), out_dtype),
        grid=(M // tm,),
        in_specs=[
            pl.BlockSpec((tm, H), lambda i: (i, 0)),
            pl.BlockSpec((1, H), lambda i: (0, 0)),
            pl.BlockSpec((1, H), lambda i: (0, 0)),
        ],
        out_specs=pl.BlockSpec((tm, H), lambda i: (i, 0)),
        compiler_params=_cparams(("parallel",)),
    )(x, gamma.reshape(1, H).astype(jnp.float32),
      beta.reshape(1, H).astype(jnp.float32))


# ----------------------- flash-style streamed attention ---------------------

def _flash_kernel(q_ref, k_ref, v_ref, bias_ref, o_ref, m_sc, l_sc, acc_sc, *,
                  scale):
    ik = pl.program_id(2)

    @pl.when(ik == 0)
    def _():
        m_sc[...] = jnp.full_like(m_sc, -jnp.inf)
        l_sc[...] = jnp.zeros_like(l_sc)
        acc_sc[...] = jnp.zeros_like(acc_sc)

    q = q_ref[0]                    # (tq, dH)  bf16
    k = k_ref[0]                    # (tkv, dH) bf16
    v = v_ref[0]                    # (tkv, dH) bf16
    s = jax.lax.dot_general(q, k, (((1,), (1,)), ((), ())),
                            preferred_element_type=jnp.float32) * scale
    s = s + bias_ref[0]             # (1, tkv) additive BERT mask broadcast

    m_new = jnp.maximum(m_sc[...], jnp.max(s, axis=-1, keepdims=True))
    alpha = jnp.exp(m_sc[...] - m_new)
    p = jnp.exp(s - m_new)
    l_sc[...] = alpha * l_sc[...] + jnp.sum(p, axis=-1, keepdims=True)
    acc_sc[...] = alpha * acc_sc[...] + jnp.dot(
        p.astype(v.dtype), v, preferred_element_type=jnp.float32)
    m_sc[...] = m_new

    @pl.when(ik == pl.num_programs(2) - 1)
    def _():
        inv = pl.reciprocal(l_sc[...], approx=True)
        o_ref[0] = (acc_sc[...] * inv).astype(o_ref.dtype)


def flash_attention(q, k, v, bias, num_heads, *, scale,
                    out_dtype=jnp.bfloat16, tq_t=256, tkv_t=256):
    BH, S, dH = q.shape
    nH = num_heads
    tq = _pick_tile(S, tq_t, 16)
    tkv = _pick_tile(S, tkv_t, 128)
    grid = (BH, S // tq, S // tkv)
    return pl.pallas_call(
        functools.partial(_flash_kernel, scale=scale),
        out_shape=jax.ShapeDtypeStruct((BH, S, dH), out_dtype),
        grid=grid,
        in_specs=[
            pl.BlockSpec((1, tq, dH), lambda b, iq, ik: (b, iq, 0)),
            pl.BlockSpec((1, tkv, dH), lambda b, iq, ik: (b, ik, 0)),
            pl.BlockSpec((1, tkv, dH), lambda b, iq, ik: (b, ik, 0)),
            pl.BlockSpec((1, 1, tkv), lambda b, iq, ik: (b // nH, 0, ik)),
        ],
        out_specs=pl.BlockSpec((1, tq, dH), lambda b, iq, ik: (b, iq, 0)),
        scratch_shapes=[
            pltpu.VMEM((tq, 1), jnp.float32),
            pltpu.VMEM((tq, 1), jnp.float32),
            pltpu.VMEM((tq, dH), jnp.float32),
        ],
        compiler_params=_cparams(("parallel", "parallel", "arbitrary")),
    )(q, k, v, bias)


# ---------------------------- fused pooler + lm_head ------------------------

def _pool_head_kernel(cls_ref, pw_ref, pb_ref, lw_ref, lb_ref, o_ref):
    pooled = jnp.tanh(
        jnp.dot(cls_ref[...], pw_ref[...],
                preferred_element_type=jnp.float32) + pb_ref[...])
    logits = jnp.dot(pooled.astype(lw_ref.dtype), lw_ref[...],
                     preferred_element_type=jnp.float32) + lb_ref[...]
    o_ref[...] = logits.astype(o_ref.dtype)


def pooler_lm_head(cls, pool_w, pool_b, lm_w, lm_b):
    B, H = cls.shape
    C = lm_w.shape[1]
    # TODO(synk): pad num_classes up to 128 lanes for unmasked stores; tiny cost.
    return pl.pallas_call(
        _pool_head_kernel,
        out_shape=jax.ShapeDtypeStruct((B, C), jnp.float32),
        grid=(1,),
        in_specs=[
            pl.BlockSpec((B, H), lambda i: (0, 0)),
            pl.BlockSpec((H, H), lambda i: (0, 0)),
            pl.BlockSpec((1, H), lambda i: (0, 0)),
            pl.BlockSpec((H, C), lambda i: (0, 0)),
            pl.BlockSpec((1, C), lambda i: (0, 0)),
        ],
        out_specs=pl.BlockSpec((B, C), lambda i: (0, 0)),
        compiler_params=_cparams(("arbitrary",)),
    )(cls, pool_w, pool_b.reshape(1, H).astype(jnp.float32),
      lm_w, lm_b.reshape(1, C).astype(jnp.float32))


# --------------------------- parameter construction ------------------------

def init_params(key, *, vocab_size, max_pos, type_vocab, hidden, inter,
                n_layers, num_classes):
    std = 0.02
    wdt = jnp.bfloat16   # matmul weights stored bf16; accumulation stays f32

    def nrm(k, shape, dtype=wdt):
        return (std * jax.random.normal(k, shape, jnp.float32)).astype(dtype)

    keys = jax.random.split(key, 8 + n_layers)
    params = {
        "word_emb": nrm(keys[0], (vocab_size, hidden), jnp.float32),
        "pos_emb": nrm(keys[1], (max_pos, hidden), jnp.float32),
        "type_emb": nrm(keys[2], (type_vocab, hidden), jnp.float32),
        "emb_ln_g": jnp.ones((hidden,), jnp.float32),
        "emb_ln_b": jnp.zeros((hidden,), jnp.float32),
        "pool_w": nrm(keys[3], (hidden, hidden)),
        "pool_b": jnp.zeros((hidden,), jnp.float32),
        "lm_w": nrm(keys[4], (hidden, num_classes)),
        "lm_b": jnp.zeros((num_classes,), jnp.float32),
        "layers": [],
    }
    for li in range(n_layers):
        lk = jax.random.split(keys[8 + li], 4)
        params["layers"].append({
            # Q|K|V fused into one [H, 3H] projection.
            "w_qkv": nrm(lk[0], (hidden, 3 * hidden)),
            "b_qkv": jnp.zeros((3 * hidden,), jnp.float32),
            "wo": nrm(lk[1], (hidden, hidden)),
            "bo": jnp.zeros((hidden,), jnp.float32),
            "ln1_g": jnp.ones((hidden,), jnp.float32),
            "ln1_b": jnp.zeros((hidden,), jnp.float32),
            "w1": nrm(lk[2], (hidden, inter)),
            "b1": jnp.zeros((inter,), jnp.float32),
            "w2": nrm(lk[3], (inter, hidden)),
            "b2": jnp.zeros((hidden,), jnp.float32),
            "ln2_g": jnp.ones((hidden,), jnp.float32),
            "ln2_b": jnp.zeros((hidden,), jnp.float32),
        })
    return params


# ------------------------------- forward pass -------------------------------

def model_forward(params, context, mask, *, num_heads):
    """Equivalent of Model.forward: pooled = BertModel(context, mask); lm_head(pooled)."""
    B, S = context.shape
    H = params["word_emb"].shape[1]
    nH = num_heads
    dH = H // nH
    M = B * S

    # Embeddings (gather is plain-JAX glue; token_type_ids default to zeros).
    emb = (params["word_emb"][context]
           + params["pos_emb"][:S][None, :, :]
           + params["type_emb"][0][None, None, :])
    h = layernorm(emb.reshape(M, H), params["emb_ln_g"], params["emb_ln_b"])

    # BERT additive mask bias, shape (B, 1, S); no per-head duplication.
    bias = ((1.0 - mask.astype(jnp.float32)) * (-10000.0)).reshape(B, 1, S)
    scale = 1.0 / math.sqrt(dH)

    for layer in params["layers"]:
        # Fused Q/K/V projection: single tiled GEMM -> [M, 3H].
        qkv = linear(h, layer["w_qkv"], layer["b_qkv"])
        # TODO(synk): head split stays plain-JAX; a pure BlockSpec lane-slice
        # would need dH to be a multiple of 128 lanes.
        qkv = (qkv.reshape(B, S, 3, nH, dH)
                   .transpose(2, 0, 3, 1, 4)
                   .reshape(3, B * nH, S, dH))
        q, k, v = qkv[0], qkv[1], qkv[2]

        ctx = flash_attention(q, k, v, bias, nH, scale=scale)
        ctx = (ctx.reshape(B, nH, S, dH)
                  .transpose(0, 2, 1, 3)
                  .reshape(M, H))

        # Attention output projection + residual + LayerNorm, fused.
        h = linear_add_layernorm(ctx, layer["wo"], layer["bo"], h,
                                 layer["ln1_g"], layer["ln1_b"])
        # FFN (GEMM -> GELU -> GEMM) + residual + LayerNorm, fused; the
        # [M, 4H] intermediate never round-trips HBM.
        h = ffn_add_layernorm(h, layer["w1"], layer["b1"], layer["w2"],
                              layer["b2"], h, layer["ln2_g"], layer["ln2_b"])

    # Pooler: CLS token -> dense -> tanh, fused with lm_head.
    cls = h.reshape(B, S, H)[:, 0, :]                      # (B, H)
    logits = pooler_lm_head(cls, params["pool_w"], params["pool_b"],
                            params["lm_w"], params["lm_b"])
    return logits                                          # (B, num_classes) f32


# ----------------------------------- main -----------------------------------

if __name__ == "__main__":
    # Small config consistent with the module's forward
    B, S = 2, 8
    HIDDEN, INTER = 32, 64
    N_HEADS, N_LAYERS = 2, 2
    VOCAB, MAX_POS, TYPE_VOCAB = 100, 64, 2
    NUM_CLASSES = 4

    key = jax.random.PRNGKey(0)
    kp, kc, km = jax.random.split(key, 3)

    params = init_params(kp, vocab_size=VOCAB, max_pos=MAX_POS,
                         type_vocab=TYPE_VOCAB, hidden=HIDDEN, inter=INTER,
                         n_layers=N_LAYERS, num_classes=NUM_CLASSES)

    # x = (context, seq_len, mask): forward uses x[0] and x[2]
    context = jax.random.randint(kc, (B, S), 0, VOCAB, dtype=jnp.int32)
    mask = jnp.ones((B, S), dtype=jnp.int32)
    mask = mask.at[1, 6:].set(0)  # some padding on the second sequence

    out = model_forward(params, context, mask, num_heads=N_HEADS)
    out = jax.block_until_ready(out)
    assert out.shape == (B, NUM_CLASSES)
    print("KERNEL_OK")
</pallas_src>

<mosaic_0001>
module attributes {stable_mosaic.version = 11 : i64} {
  func.func @_ln_kernel(%arg0: i32, %arg1: memref<16x32xf32, #tpu.memory_space<vmem>>, %arg2: memref<1x32xf32, #tpu.memory_space<vmem>>, %arg3: memref<1x32xf32, #tpu.memory_space<vmem>>, %arg4: memref<16x32xbf16, #tpu.memory_space<vmem>>) attributes {dimension_semantics = [#tpu.dimension_semantics<parallel>], iteration_bounds = array<i64: 1>, scalar_prefetch = 0 : i64, scratch_operands = 0 : i64, tpu.core_type = #tpu.core_type<tc>, window_params = [{transform_indices = @transform_0, window_bounds = array<i64: 16, 32>}, {pipeline_mode = #tpu.pipeline_mode<synchronous>, transform_indices = @transform_1, window_bounds = array<i64: 1, 32>}, {pipeline_mode = #tpu.pipeline_mode<synchronous>, transform_indices = @transform_2, window_bounds = array<i64: 1, 32>}, {transform_indices = @transform_3, window_bounds = array<i64: 16, 32>}]} {
    %c0 = arith.constant 0 : index
    %c0_0 = arith.constant 0 : index
    %0 = vector.load %arg1[%c0, %c0_0] : memref<16x32xf32, #tpu.memory_space<vmem>>, vector<16x32xf32>
    %cst = arith.constant dense<0.000000e+00> : vector<16xf32>
    %1 = vector.multi_reduction <add>, %0, %cst [1] : vector<16x32xf32> to vector<16xf32>
    %2 = vector.shape_cast %1 : vector<16xf32> to vector<16x1xf32>
    %cst_1 = arith.constant 3.200000e+01 : f32
    %3 = vector.broadcast %cst_1 : f32 to vector<16x1xf32>
    %4 = arith.divf %2, %3 : vector<16x1xf32>
    %5 = vector.broadcast %4 : vector<16x1xf32> to vector<16x32xf32>
    %6 = arith.subf %0, %5 : vector<16x32xf32>
    %7 = arith.mulf %6, %6 : vector<16x32xf32>
    %cst_2 = arith.constant dense<0.000000e+00> : vector<16xf32>
    %8 = vector.multi_reduction <add>, %7, %cst_2 [1] : vector<16x32xf32> to vector<16xf32>
    %9 = vector.shape_cast %8 : vector<16xf32> to vector<16x1xf32>
    %cst_3 = arith.constant 3.200000e+01 : f32
    %10 = vector.broadcast %cst_3 : f32 to vector<16x1xf32>
    %11 = arith.divf %9, %10 : vector<16x1xf32>
    %12 = vector.broadcast %4 : vector<16x1xf32> to vector<16x32xf32>
    %13 = arith.subf %0, %12 : vector<16x32xf32>
    %cst_4 = arith.constant 9.99999996E-13 : f32
    %14 = vector.broadcast %cst_4 : f32 to vector<16x1xf32>
    %15 = arith.addf %11, %14 : vector<16x1xf32>
    %16 = math.rsqrt %15 : vector<16x1xf32>
    %17 = vector.broadcast %16 : vector<16x1xf32> to vector<16x32xf32>
    %18 = arith.mulf %13, %17 : vector<16x32xf32>
    %c0_5 = arith.constant 0 : index
    %c0_6 = arith.constant 0 : index
    %19 = vector.load %arg2[%c0_5, %c0_6] : memref<1x32xf32, #tpu.memory_space<vmem>>, vector<1x32xf32>
    %20 = vector.broadcast %19 : vector<1x32xf32> to vector<16x32xf32>
    %21 = arith.mulf %18, %20 : vector<16x32xf32>
    %c0_7 = arith.constant 0 : index
    %c0_8 = arith.constant 0 : index
    %22 = vector.load %arg3[%c0_7, %c0_8] : memref<1x32xf32, #tpu.memory_space<vmem>>, vector<1x32xf32>
    %23 = vector.broadcast %22 : vector<1x32xf32> to vector<16x32xf32>
    %24 = arith.addf %21, %23 : vector<16x32xf32>
    %25 = arith.truncf %24 : vector<16x32xf32> to vector<16x32xbf16>
    %c0_9 = arith.constant 0 : index
    %c0_10 = arith.constant 0 : index
    %26 = vector.load %arg4[%c0_9, %c0_10] : memref<16x32xbf16, #tpu.memory_space<vmem>>, vector<16x32xbf16>
    tpu.vector_store %arg4[%c0_9, %c0_10], %25 {strides = array<i32>} : memref<16x32xbf16, #tpu.memory_space<vmem>>, vector<16x32xbf16>,
    return
  }
  func.func @transform_0(%arg0: i32) -> (i32, i32) {
    %c0_i32 = arith.constant 0 : i32
    %c0_i32_0 = arith.constant 0 : i32
    return %arg0, %c0_i32 : i32, i32
  }
  func.func @transform_1(%arg0: i32) -> (i32, i32) {
    %c0_i32 = arith.constant 0 : i32
    %c0_i32_0 = arith.constant 0 : i32
    %c0_i32_1 = arith.constant 0 : i32
    return %c0_i32, %c0_i32_0 : i32, i32
  }
  func.func @transform_2(%arg0: i32) -> (i32, i32) {
    %c0_i32 = arith.constant 0 : i32
    %c0_i32_0 = arith.constant 0 : i32
    %c0_i32_1 = arith.constant 0 : i32
    return %c0_i32, %c0_i32_0 : i32, i32
  }
  func.func @transform_3(%arg0: i32) -> (i32, i32) {
    %c0_i32 = arith.constant 0 : i32
    %c0_i32_0 = arith.constant 0 : i32
    return %arg0, %c0_i32 : i32, i32
  }
}

</mosaic_0001>

<llo_original>
// kernel: tpu_custom_call.1
$region0: #{tpu_custom_call.1}
  #allocation0 [shape = 'u32[]', space=smem, size = 0x4, offset = 0x4, fixed_abs, tag = 'smem constant byte address 0x4 - core index']
  #allocation1 [shape = 'u32[72,128]{1,0:T(1,128)}', space=vmem, size = 0x9000, scoped, tag = 'internal scratch']
  %s0 = inlined_call_operand.hbm [shape: f32[16,32], index: 0, kind: input, shape index: {}]
  %s1 = inlined_call_operand.hbm [shape: f32[1,32], index: 1, kind: input, shape index: {}]
  %s2 = inlined_call_operand.vmem [shape: f32[1,32], index: 2, kind: input, shape index: {}]
  %s3 = inlined_call_operand.hbm [shape: bf16[16,32], index: 3, kind: output, shape index: {}]
  %s4 = sld [smem:[#allocation0]]
  $region30: #{tpu_custom_call.1} parent=0
    _
  %s6 = ssub.s32 1, %s4
  %s7 = scalar_select 0, %s6, %s4
  $region1: #{tpu_custom_call.1} parent=0
    #allocation2 [shape = 'u8[8192]{0}', space=vmem, size = 0x2000, scoped, tag = 'input window, operand 0, single buffered']
    #allocation3 [shape = 's32[1]{0}', space=sflag, size = 0x4, scoped, tag = 'scoped memory for tpu_custom_call.1']
    #allocation4 [shape = 's32[1]{0}', space=sflag, size = 0x4, scoped, tag = 'scoped memory for tpu_custom_call.1']
    #allocation5 [shape = 'u8[512]{0}', space=vmem, size = 0x400, scoped, tag = 'input window, operand 1, single buffered']
    #allocation6 [shape = 's32[1]{0}', space=sflag, size = 0x4, scoped, tag = 'scoped memory for tpu_custom_call.1']
    #allocation7 [shape = 'u8[4096]{0}', space=vmem, size = 0x1000, scoped, tag = 'output window, operand 0, single buffered']
    %8 = vsyncpa [#allocation3], 0
    %9 = vsyncpa [#allocation6], 0
    %10 = vsyncpa [#allocation4], 0
    // Predicated region
    $region2: #{tpu_custom_call.1} parent=1 // pred_check
      _
    $region3: #{tpu_custom_call.1} parent=1 // pred_check_branch
      %12 = sbr.rel (0) target = $region5
    $region4: #{tpu_custom_call.1} parent=1 // pred_region
      %14 = vsyncadd [#allocation3], 0
      %s15 = sshll.u32 %s0, 4
      %s16 = int_to_ptr.hbm [resolvable:$true] %s15
      %s17 = sshll.u32 [#allocation2], 4
      %s18 = int_to_ptr.vmem [resolvable:$true] %s17
      %23 = dma.hbm_to_vmem [thread:$0]  %s16, 256, %s18, [#allocation3], 128, 128, 8
    $region5: #{tpu_custom_call.1} parent=1 // pred_fallthru
      _
    // Predicated region
    $region6: #{tpu_custom_call.1} parent=1 // pred_check
      _
    $region7: #{tpu_custom_call.1} parent=1 // pred_check_branch
      %25 = sbr.rel (0) target = $region9
    $region8: #{tpu_custom_call.1} parent=1 // pred_region
      %27 = vsyncadd [#allocation6], 0
      %s29 = sshll.u32 %s1, 4
      %s30 = int_to_ptr.hbm [resolvable:$true] %s29
      %s31 = sshll.u32 [#allocation5], 4
      %s32 = int_to_ptr.vmem [resolvable:$true] %s31
      %34 = dma.hbm_to_vmem [thread:$0]  %s30, 16, %s32, [#allocation6]
    $region9: #{tpu_custom_call.1} parent=1 // pred_fallthru
      _
    // Predicated region
    $region10: #{tpu_custom_call.1} parent=1 // pred_check
      _
    $region11: #{tpu_custom_call.1} parent=1 // pred_check_branch
      %36 = sbr.rel (0) target = $region13
    $region12: #{tpu_custom_call.1} parent=1 // pred_region
      _
    $region13: #{tpu_custom_call.1} parent=1 // pred_fallthru
      _
    // Predicated region
    $region14: #{tpu_custom_call.1} parent=1 // pred_check
      _
    $region15: #{tpu_custom_call.1} parent=1 // pred_check_branch
      %38 = sbr.rel (0) target = $region17
    $region16: #{tpu_custom_call.1} parent=1 // pred_region
      %40 = dma.done [#allocation3], 256
    $region17: #{tpu_custom_call.1} parent=1 // pred_fallthru
      _
    // Predicated region
    $region18: #{tpu_custom_call.1} parent=1 // pred_check
      _
    $region19: #{tpu_custom_call.1} parent=1 // pred_check_branch
      %42 = sbr.rel (0) target = $region21
    $region20: #{tpu_custom_call.1} parent=1 // pred_region
      %44 = dma.done [#allocation6], 16
    $region21: #{tpu_custom_call.1} parent=1 // pred_fallthru
      _
    %v45 = vld [vmem:[#allocation2] sm:$0xff]
    %v46 = vld [vmem:[#allocation2 + $0x8] sm:$0xff]
    %vm47 = vcmask 261120
    %v48 = vsel %vm47, %v45, 0.0
    %49 = vadd.xlane.f32.xlu0 %v48
    %v50 = vpop.xlane.xlu0 %49
    %v51 = vsel %vm47, %v46, 0.0
    %52 = vadd.xlane.f32.xlu0 %v51
    %v53 = vpop.xlane.xlu0 %52
    %v54 = vrcp.pop 32.0
    %v55 = vmul.f32 32.0, %v54
    %v56 = vsub.f32 1.0, %v55
    %v57 = vmul.f32 %v54, %v56
    %v58 = vadd.f32 %v54, %v57
    %vm59 = vweird.f32 %v54
    %v60 = vsel %vm59, %v54, %v58
    %v61 = vmul.f32 %v50, %v60
    %v62 = vmul.f32 %v53, %v60
    %v63 = vsub.f32 %v45, %v61
    %v64 = vsub.f32 %v46, %v62
    %v65 = vmul.f32 %v63, %v63
    %v66 = vmul.f32 %v64, %v64
    %v67 = vsel %vm47, %v65, 0.0
    %68 = vadd.xlane.f32.xlu0 %v67
    %v69 = vpop.xlane.xlu0 %68
    %v70 = vsel %vm47, %v66, 0.0
    %71 = vadd.xlane.f32.xlu0 %v70
    %v72 = vpop.xlane.xlu0 %71
    %v73 = vmul.f32 %v69, %v60
    %v74 = vmul.f32 %v72, %v60
    %v75 = vadd.f32 %v73, 1e-12
    %v76 = vadd.f32 %v74, 1e-12
    %v77 = vrsqrt.pop %v75
    %v78 = vmul.f32 %v77, %v75
    %v79 = vmul.f32 %v78, %v77
    %v80 = vmul.f32 0.5, %v79
    %v81 = vsub.f32 1.5, %v80
    %v82 = vmul.f32 %v77, %v81
    %vm83 = vweird.f32 %v75
    %vm84 = vweird.f32 %v77
    %vm85 = vmor %vm83, %vm84
    %v86 = vsel %vm85, %v77, %v82
    %v87 = vrsqrt.pop %v76
    %v88 = vmul.f32 %v87, %v76
    %v89 = vmul.f32 %v88, %v87
    %v90 = vmul.f32 0.5, %v89
    %v91 = vsub.f32 1.5, %v90
    %v92 = vmul.f32 %v87, %v91
    %vm93 = vweird.f32 %v76
    %vm94 = vweird.f32 %v87
    %vm95 = vmor %vm93, %vm94
    %v96 = vsel %vm95, %v87, %v92
    %v97 = vmul.f32 %v63, %v86
    %v98 = vmul.f32 %v64, %v96
    %v99 = vld [vmem:[#allocation5] sm:$0x1]
    %v101 = vperm.slane %v99, 0
    %v103 = vmul.f32 %v97, %v101
    %v104 = vmul.f32 %v98, %v101
    %v105 = vld [vmem:[%s2] sm:$0x1]
    %v107 = vperm.slane %v105, 0
    %v109 = vadd.f32 %v103, %v107
    %v110 = vadd.f32 %v104, %v107
    %v111 = vpack.c.bf16 %v109, %v109
    %v112 = vpack.c.bf16 %v110, %v110
    %vm113 = vcmask 257024
    %114 = vst.msk [vmem:[#allocation7] sm:$0xf] %vm113, %v111
    %115 = vst.msk [vmem:[#allocation7 + $0x4] sm:$0xf] %vm113, %v112
    // Predicated region
    $region22: #{tpu_custom_call.1} parent=1 // pred_check
      _
    $region23: #{tpu_custom_call.1} parent=1 // pred_check_branch
      %117 = sbr.rel (0) target = $region25
    $region24: #{tpu_custom_call.1} parent=1 // pred_region
      %119 = vsyncadd [#allocation4], 0
      %s120 = sshll.u32 [#allocation7], 4
      %s121 = int_to_ptr.vmem [resolvable:$true] %s120
      %s122 = sshll.u32 %s3, 4
      %s123 = int_to_ptr.hbm [resolvable:$true] %s122
      %128 = dma.vmem_to_hbm [thread:$0]  %s121, 128, %s123, [#allocation4], 64, 64, 4
    $region25: #{tpu_custom_call.1} parent=1 // pred_fallthru
      _
    // Predicated region
    $region26: #{tpu_custom_call.1} parent=1 // pred_check
      _
    $region27: #{tpu_custom_call.1} parent=1 // pred_check_branch
      %130 = sbr.rel (0) target = $region29
    $region28: #{tpu_custom_call.1} parent=1 // pred_region
      %132 = dma.done [#allocation4], 128
    $region29: #{tpu_custom_call.1} parent=1 // pred_fallthru
      _
    %133 = vsyncpa [#allocation3], 1
    %134 = vsyncpa [#allocation6], 1
    %135 = vsyncpa [#allocation4], 1

</llo_original>
